<compile_context>
chip_gen: v6e
topology: v6e:2x2x1
jax: 0.10.0
libtpu: 0.0.40
codegen_flags: <defaults>
</compile_context>

<pallas_src>
import jax
import jax.numpy as jnp
import numpy as np
from jax.experimental import pallas as pl
from jax.experimental.pallas import tpu as pltpu

_RMS_EPS = 1.1920929e-07  # torch.finfo(float32).eps (F.rms_norm default)


# ----------------------------------------------------------------------------
# QKV projection:  (T, dim) x (3*H*D, dim)^T  ->  (3H, T, D)  bf16, head-blocked
# Full-K contraction per step (no K grid axis, no output read-modify-write).
# ----------------------------------------------------------------------------
def _qkv_proj_kernel(a_ref, b_ref, o_ref):
    # a: (tm, dim) bf16, b: (D, dim) bf16 -> o: (1, tm, D) bf16
    o_ref[0] = jax.lax.dot_general(
        a_ref[...], b_ref[...], (((1,), (1,)), ((), ())),
        preferred_element_type=jnp.float32).astype(o_ref.dtype)


def qkv_project(a, b, *, head_dim, tm=128):
    M, K = a.shape
    N, Kb = b.shape
    D = head_dim
    assert K == Kb and M % tm == 0 and N % D == 0 and D % 128 == 0
    nh = N // D
    # TODO(synk): for very large `dim` (full-K block of several MiB) fall back
    # to a K-tiled grid with an accumulator; not needed for typical GPT widths.
    return pl.pallas_call(
        _qkv_proj_kernel,
        out_shape=jax.ShapeDtypeStruct((nh, M, D), jnp.bfloat16),
        grid=(M // tm, nh),
        in_specs=[pl.BlockSpec((tm, K), lambda i, j: (i, 0)),   # a reused across j
                  pl.BlockSpec((D, K), lambda i, j: (j, 0))],
        out_specs=pl.BlockSpec((1, tm, D), lambda i, j: (j, i, 0)),
        compiler_params=pltpu.CompilerParams(
            dimension_semantics=("parallel", "parallel")),
    )(a, b)


# ----------------------------------------------------------------------------
# Output projection: yh (H, T, D) bf16 x c_proj_w (dim, H*D)^T bf16 -> (T, dim)
# Full contraction over H*D per step (static unrolled head loop in-kernel).
# ----------------------------------------------------------------------------
def _make_out_proj_kernel(num_heads, head_dim):
    H, D = num_heads, head_dim

    def kernel(a_ref, b_ref, o_ref):
        # a: (H, tm, D) bf16, b: (tn, H*D) bf16 -> o: (tm, tn) f32
        acc = jnp.zeros(o_ref.shape, jnp.float32)
        for h in range(H):                      # static unroll over heads
            acc = acc + jax.lax.dot_general(
                a_ref[h], b_ref[:, h * D:(h + 1) * D],
                (((1,), (1,)), ((), ())), preferred_element_type=jnp.float32)
        o_ref[...] = acc.astype(o_ref.dtype)

    return kernel


def out_project(yh, w, *, tm=128, tn=128):
    H, T, D = yh.shape
    N, K = w.shape
    assert K == H * D and T % tm == 0 and N % tn == 0
    return pl.pallas_call(
        _make_out_proj_kernel(H, D),
        out_shape=jax.ShapeDtypeStruct((T, N), jnp.float32),
        grid=(T // tm, N // tn),
        in_specs=[pl.BlockSpec((H, tm, D), lambda i, j: (0, i, 0)),  # reused over j
                  pl.BlockSpec((tn, K), lambda i, j: (j, 0))],
        out_specs=pl.BlockSpec((tm, tn), lambda i, j: (i, j)),
        compiler_params=pltpu.CompilerParams(
            dimension_semantics=("parallel", "parallel")),
    )(yh, w)


# ----------------------------------------------------------------------------
# Fused prep kernel: q/k RMS-norm + rotary (+0.12 scale folded into q) and the
# lambdas value mixing, all in ONE pass over the bf16 (3H, T, D) qkv tensor.
# Emits bf16 q_scaled / k_rot / v_mixed, head-blocked (H, T, D).
# ----------------------------------------------------------------------------
def _make_qkv_prep_kernel(*, eps, scale, has_ve):
    def kernel(*refs):
        if has_ve:
            (lam_ref, q_in_ref, k_in_ref, v_in_ref, ve_ref,
             cos_ref, sin_ref, q_out_ref, k_out_ref, v_out_ref) = refs
        else:
            (lam_ref, q_in_ref, k_in_ref, v_in_ref,
             cos_ref, sin_ref, q_out_ref, k_out_ref, v_out_ref) = refs
            ve_ref = None

        cos2 = cos_ref[...]          # (tq, D)
        sin2 = sin_ref[...]          # (tq, D)  (second half already negated)

        def norm_rope(x_ref, o_ref, mul):
            x = x_ref[0].astype(jnp.float32)                          # (tq, D)
            xn = x * jax.lax.rsqrt(jnp.mean(x * x, axis=-1, keepdims=True) + eps)
            d2 = xn.shape[-1] // 2
            # half-width lane swap == roll by D/2 (direction irrelevant at D/2)
            xr = jnp.concatenate([xn[:, d2:], xn[:, :d2]], axis=-1)
            y = xn * cos2 + xr * sin2
            if mul is not None:
                y = y * mul
            o_ref[0] = y.astype(o_ref.dtype)

        norm_rope(q_in_ref, q_out_ref, scale)    # softmax scale folded into q
        norm_rope(k_in_ref, k_out_ref, None)

        v = lam_ref[0] * v_in_ref[0].astype(jnp.float32)
        if has_ve:
            v = v + lam_ref[1] * ve_ref[...].astype(jnp.float32)
        v_out_ref[0] = v.astype(v_out_ref.dtype)

    return kernel


def qkv_prep(qkv3, ve2, lam, cos2, sin2, *, num_heads, scale, tq=128):
    three_h, T, D = qkv3.shape
    H = num_heads
    assert three_h == 3 * H and T % tq == 0
    has_ve = ve2 is not None

    in_specs = [
        pl.BlockSpec(memory_space=pltpu.MemorySpace.SMEM),               # lambdas
        pl.BlockSpec((1, tq, D), lambda i, h: (h, i, 0)),                # q rows
        pl.BlockSpec((1, tq, D), lambda i, h, H=H: (H + h, i, 0)),       # k rows
        pl.BlockSpec((1, tq, D), lambda i, h, H=H: (2 * H + h, i, 0)),   # v rows
    ]
    args = [lam, qkv3, qkv3, qkv3]
    if has_ve:
        in_specs.append(pl.BlockSpec((tq, D), lambda i, h: (i, h)))      # ve (T, H*D)
        args.append(ve2)
    # heads innermost -> cos/sin block index unchanged across h (DMA elided)
    in_specs += [pl.BlockSpec((tq, D), lambda i, h: (i, 0)),
                 pl.BlockSpec((tq, D), lambda i, h: (i, 0))]
    args += [cos2, sin2]

    out_spec = pl.BlockSpec((1, tq, D), lambda i, h: (h, i, 0))
    out_sds = jax.ShapeDtypeStruct((H, T, D), jnp.bfloat16)
    kernel = _make_qkv_prep_kernel(eps=_RMS_EPS, scale=scale, has_ve=has_ve)
    return pl.pallas_call(
        kernel,
        out_shape=(out_sds, out_sds, out_sds),
        grid=(T // tq, H),
        in_specs=in_specs,
        out_specs=(out_spec, out_spec, out_spec),
        compiler_params=pltpu.CompilerParams(
            dimension_semantics=("parallel", "parallel")),
    )(*args)


# ----------------------------------------------------------------------------
# Causal flash attention over a flattened triangular (qi, ki) schedule driven
# by scalar prefetch.  Masking only on diagonal blocks.  q is pre-scaled and
# v pre-mixed, so the inner loop is pure MXU + online softmax.
# ----------------------------------------------------------------------------
def _attn_kernel(qi_map_ref, ki_map_ref, q_ref, k_ref, v_ref, o_ref,
                 m_sc, l_sc, acc_sc):
    t = pl.program_id(1)
    qi = qi_map_ref[t]
    ki = ki_map_ref[t]

    @pl.when(ki == 0)
    def _():
        m_sc[...] = jnp.full_like(m_sc, -jnp.inf)
        l_sc[...] = jnp.zeros_like(l_sc)
        acc_sc[...] = jnp.zeros_like(acc_sc)

    # scores on the MXU (bf16 x bf16 -> f32); 0.12 scale already folded into q
    s = jax.lax.dot_general(q_ref[0], k_ref[0], (((1,), (1,)), ((), ())),
                            preferred_element_type=jnp.float32)      # (tq, tk)

    def online_update(scores):
        m_prev = m_sc[...]
        m_new = jnp.maximum(m_prev, scores.max(axis=-1, keepdims=True))
        alpha = jnp.exp(m_prev - m_new)
        p = jnp.exp(scores - m_new)
        l_sc[...] = alpha * l_sc[...] + p.sum(axis=-1, keepdims=True)
        acc_sc[...] = alpha * acc_sc[...] + jnp.dot(
            p.astype(jnp.bfloat16), v_ref[0], preferred_element_type=jnp.float32)
        m_sc[...] = m_new

    @pl.when(ki < qi)           # strictly below the diagonal: no mask needed
    def _():
        online_update(s)

    @pl.when(ki == qi)          # diagonal block: mask, update, finalize
    def _():
        r = jax.lax.broadcasted_iota(jnp.int32, s.shape, 0)
        c = jax.lax.broadcasted_iota(jnp.int32, s.shape, 1)
        online_update(jnp.where(r >= c, s, -jnp.inf))
        o_ref[0] = (acc_sc[...] * pl.reciprocal(l_sc[...], approx=True)
                    ).astype(o_ref.dtype)


def flash_attention_causal(q, k, v, *, tq=128, tk=128):
    H, T, D = q.shape
    assert tq == tk and T % tq == 0
    nq = T // tq

    # flattened lower-triangular schedule: (qi, ki) with ki <= qi.  The output
    # block is only written on the diagonal step, so the diagonal MUST be the
    # last step for each qi (guaranteed by construction; asserted below).
    qi_idx, ki_idx = [], []
    for qi in range(nq):
        for ki in range(qi + 1):
            qi_idx.append(qi)
            ki_idx.append(ki)
    for qi in range(nq):
        last = max(t for t, v_ in enumerate(qi_idx) if v_ == qi)
        assert ki_idx[last] == qi, "diagonal block must be last for each qi"
    qi_map = jnp.asarray(np.asarray(qi_idx, np.int32))
    ki_map = jnp.asarray(np.asarray(ki_idx, np.int32))
    total = len(qi_idx)
    # TODO(synk): for very long T, switch to grid=(H, nq) with an in-kernel ki
    # loop so the schedule arrays don't grow as (T/tq)^2/2 in SMEM.

    grid_spec = pltpu.PrefetchScalarGridSpec(
        num_scalar_prefetch=2,
        grid=(H, total),
        in_specs=[
            pl.BlockSpec((1, tq, D), lambda h, t, qm, km: (h, qm[t], 0)),   # q
            pl.BlockSpec((1, tk, D), lambda h, t, qm, km: (h, km[t], 0)),   # k
            pl.BlockSpec((1, tk, D), lambda h, t, qm, km: (h, km[t], 0)),   # v
        ],
        out_specs=pl.BlockSpec((1, tq, D), lambda h, t, qm, km: (h, qm[t], 0)),
        scratch_shapes=[pltpu.VMEM((tq, 1), jnp.float32),
                        pltpu.VMEM((tq, 1), jnp.float32),
                        pltpu.VMEM((tq, D), jnp.float32)],
    )
    # TODO(synk): on v7x with small/odd H, split the triangular schedule across
    # the two TensorCores instead of only the head axis for better balance.
    return pl.pallas_call(
        _attn_kernel,
        out_shape=jax.ShapeDtypeStruct((H, T, D), jnp.bfloat16),
        grid_spec=grid_spec,
        compiler_params=pltpu.CompilerParams(
            dimension_semantics=("parallel", "arbitrary")),
    )(qi_map, ki_map, q, k, v)


# ----------------------------------------------------------------------------
# Rotary tables (full-width; sign folded so rope = x*cos2 + swap(x)*sin2)
# ----------------------------------------------------------------------------
def rotary_tables(T, head_dim):
    angular_freq = (1.0 / 1024.0) ** jnp.linspace(0.0, 1.0, head_dim // 4)
    angular_freq = jnp.concatenate(
        [angular_freq, jnp.zeros(head_dim // 4, jnp.float32)])
    t = jnp.arange(T, dtype=jnp.float32)
    theta = t[:, None] * angular_freq[None, :]              # (T, D//2)
    cos, sin = jnp.cos(theta), jnp.sin(theta)
    cos2 = jnp.concatenate([cos, cos], axis=-1)             # (T, D)
    sin2 = jnp.concatenate([sin, -sin], axis=-1)            # (T, D)
    return cos2, sin2


# ----------------------------------------------------------------------------
# Full CausalSelfAttention forward
# ----------------------------------------------------------------------------
def causal_self_attention_forward(x, ve, params, *, tq=128, tk=128, tm=128, tn=128):
    qkv_w = params["qkv_w"]            # (3, H*D, dim)
    lambdas = params["lambdas"]        # (2,)
    c_proj_w = params["c_proj_w"]      # (dim, H*D)
    H = params["num_heads"]
    D = params["head_dim"]
    B, T, dim = x.shape
    assert B == 1, "Must use batch size = 1 (matches FlexAttention constraint)"
    hdim = H * D

    # one-time bf16 casts (no per-grid-step casts inside the kernels)
    x2 = x[0].astype(jnp.bfloat16)
    w_flat = qkv_w.reshape(3 * hdim, dim).astype(jnp.bfloat16)
    wo = c_proj_w.astype(jnp.bfloat16)

    # QKV projection, head-blocked bf16 output (3H, T, D)
    qkv3 = qkv_project(x2, w_flat, head_dim=D, tm=tm)

    # fused RMS-norm + rotary (+0.12 scale on q) + lambdas value mixing -> bf16
    cos2, sin2 = rotary_tables(T, D)
    lam = lambdas.astype(jnp.float32)
    ve2 = ve.reshape(T, hdim).astype(jnp.bfloat16) if ve is not None else None
    q_s, k_r, v_m = qkv_prep(qkv3, ve2, lam, cos2, sin2,
                             num_heads=H, scale=0.12, tq=tq)

    # causal flash attention -> bf16 (H, T, D)
    yh = flash_attention_causal(q_s, k_r, v_m, tq=tq, tk=tk)

    # output projection reads yh head-blocked; c_proj weight untransposed
    out = out_project(yh, wo, tm=tm, tn=tn)                  # (T, dim) f32
    return out[None], yh


# ----------------------------------------------------------------------------
# Pure-JAX reference for verification
# ----------------------------------------------------------------------------
def reference_forward(x, ve, params):
    qkv_w, lambdas, c_proj_w = params["qkv_w"], params["lambdas"], params["c_proj_w"]
    H, D = params["num_heads"], params["head_dim"]
    B, T, dim = x.shape
    hdim = H * D
    hp = jax.lax.Precision.HIGHEST

    w = qkv_w.reshape(3 * hdim, dim)
    qkv = jnp.einsum("td,ed->te", x[0], w, precision=hp).reshape(T, 3 * H, D)
    q, k, v = jnp.split(qkv, 3, axis=-2)

    def rms(z):
        return z * jax.lax.rsqrt(jnp.mean(z * z, -1, keepdims=True) + _RMS_EPS)

    q, k = rms(q), rms(k)
    cos2, sin2 = rotary_tables(T, D)
    cos = cos2[:, : D // 2][:, None, :]
    sin = -sin2[:, D // 2:][:, None, :]

    def rope(z):
        z1, z2 = jnp.split(z, 2, axis=-1)
        return jnp.concatenate([z1 * cos + z2 * sin, -z1 * sin + z2 * cos], -1)

    q, k = rope(q), rope(k)
    if ve is not None:
        v = lambdas[0] * v + lambdas[1] * ve.reshape(T, H, D)
    else:
        v = lambdas[0] * v

    qh, kh, vh = (jnp.transpose(z, (1, 0, 2)) for z in (q, k, v))
    s = 0.12 * jnp.einsum("htd,hsd->hts", qh, kh, precision=hp)
    mask = jnp.tril(jnp.ones((T, T), bool))
    s = jnp.where(mask[None], s, -jnp.inf)
    p = jax.nn.softmax(s, axis=-1)
    yh = jnp.einsum("hts,hsd->htd", p, vh, precision=hp)
    y = jnp.transpose(yh, (1, 0, 2)).reshape(T, hdim)
    out = jnp.einsum("te,de->td", y, c_proj_w, precision=hp)
    return out[None], yh


if __name__ == "__main__":
    B, T, dim = 1, 256, 128
    num_heads, head_dim = 2, 128
    hdim = num_heads * head_dim

    key = jax.random.PRNGKey(0)
    kx, kqkv, kve, kcp = jax.random.split(key, 4)

    # parameter init matching CausalSelfAttention.__init__ ...
    bound = (3.0 ** 0.5) * 0.5 * dim ** (-0.5)
    qkv_w = jax.random.uniform(kqkv, (3, hdim, dim), jnp.float32, -bound, bound)
    lambdas = jnp.array([0.5, 0.5], jnp.float32)
    # ... except c_proj.weight, which the module zero-inits; a random weight is
    # used here so the output-projection kernel is actually exercised.
    cp_bound = (3.0 ** 0.5) * 0.5 * hdim ** (-0.5)
    c_proj_w = jax.random.uniform(kcp, (dim, hdim), jnp.float32, -cp_bound, cp_bound)

    x = jax.random.normal(kx, (B, T, dim), jnp.float32)
    ve = jax.random.normal(kve, (B, T, num_heads, head_dim), jnp.float32)

    params = dict(qkv_w=qkv_w, lambdas=lambdas, c_proj_w=c_proj_w,
                  num_heads=num_heads, head_dim=head_dim)

    out, yh = causal_self_attention_forward(x, ve, params)
    out = jax.block_until_ready(out)
    yh = jax.block_until_ready(yh)

    ref_out, ref_yh = reference_forward(x, ve, params)
    np.testing.assert_allclose(np.asarray(yh.astype(jnp.float32)),
                               np.asarray(ref_yh), rtol=2e-2, atol=3e-2)
    np.testing.assert_allclose(np.asarray(out), np.asarray(ref_out),
                               rtol=2e-2, atol=3e-2)
    print("KERNEL_OK")
</pallas_src>

<mosaic_0001>
module attributes {stable_mosaic.version = 11 : i64} {
  func.func @_qkv_proj_kernel(%arg0: i32, %arg1: i32, %arg2: memref<128x128xbf16, #tpu.memory_space<vmem>>, %arg3: memref<128x128xbf16, #tpu.memory_space<vmem>>, %arg4: memref<1x128x128xbf16, #tpu.memory_space<vmem>>) attributes {dimension_semantics = [#tpu.dimension_semantics<parallel>, #tpu.dimension_semantics<parallel>], iteration_bounds = array<i64: 2, 6>, scalar_prefetch = 0 : i64, scratch_operands = 0 : i64, tpu.core_type = #tpu.core_type<tc>, window_params = [{transform_indices = @transform_0, window_bounds = array<i64: 128, 128>}, {transform_indices = @transform_1, window_bounds = array<i64: 128, 128>}, {transform_indices = @transform_2, window_bounds = array<i64: 1, 128, 128>}]} {
    %c0 = arith.constant 0 : index
    %c0_0 = arith.constant 0 : index
    %0 = vector.load %arg2[%c0, %c0_0] : memref<128x128xbf16, #tpu.memory_space<vmem>>, vector<128x128xbf16>
    %c0_1 = arith.constant 0 : index
    %c0_2 = arith.constant 0 : index
    %1 = vector.load %arg3[%c0_1, %c0_2] : memref<128x128xbf16, #tpu.memory_space<vmem>>, vector<128x128xbf16>
    %cst = arith.constant dense<0.000000e+00> : vector<128x128xf32>
    %2 = tpu.matmul %0, %1, %cst {dimension_numbers = #tpu.dot_dimension_numbers<[1], [1], [0], [0], [0, 0, 1, 0], [], []>} : vector<128x128xbf16>, vector<128x128xbf16>, vector<128x128xf32> -> vector<128x128xf32>
    %3 = arith.truncf %2 : vector<128x128xf32> to vector<128x128xbf16>
    %c0_3 = arith.constant 0 : index
    %c0_4 = arith.constant 0 : index
    %c0_5 = arith.constant 0 : index
    %4 = vector.load %arg4[%c0_3, %c0_4, %c0_5] : memref<1x128x128xbf16, #tpu.memory_space<vmem>>, vector<1x128x128xbf16>
    %5 = vector.shape_cast %4 : vector<1x128x128xbf16> to vector<128x128xbf16>
    %6 = vector.shape_cast %3 : vector<128x128xbf16> to vector<1x128x128xbf16>
    tpu.vector_store %arg4[%c0_3, %c0_4, %c0_5], %6 {strides = array<i32>} : memref<1x128x128xbf16, #tpu.memory_space<vmem>>, vector<1x128x128xbf16>,
    return
  }
  func.func @transform_0(%arg0: i32, %arg1: i32) -> (i32, i32) {
    %c0_i32 = arith.constant 0 : i32
    %c0_i32_0 = arith.constant 0 : i32
    return %arg0, %c0_i32 : i32, i32
  }
  func.func @transform_1(%arg0: i32, %arg1: i32) -> (i32, i32) {
    %c0_i32 = arith.constant 0 : i32
    %c0_i32_0 = arith.constant 0 : i32
    return %arg1, %c0_i32 : i32, i32
  }
  func.func @transform_2(%arg0: i32, %arg1: i32) -> (i32, i32, i32) {
    %c0_i32 = arith.constant 0 : i32
    %c0_i32_0 = arith.constant 0 : i32
    return %arg1, %arg0, %c0_i32 : i32, i32, i32
  }
}

</mosaic_0001>

<llo_original>
// kernel: tpu_custom_call.1
$region0: #{tpu_custom_call.1}
  #allocation0 [shape = 'u32[]', space=smem, size = 0x4, offset = 0x4, fixed_abs, tag = 'smem constant byte address 0x4 - core index']
  #allocation1 [shape = 'u32[144,128]{1,0:T(1,128)}', space=vmem, size = 0x12000, scoped, tag = 'internal scratch']
  %s0 = inlined_call_operand.hbm [shape: bf16[256,128], index: 0, kind: input, shape index: {}]
  %s1 = inlined_call_operand.hbm [shape: bf16[768,128], index: 1, kind: input, shape index: {}]
  %s2 = inlined_call_operand.hbm [shape: bf16[6,256,128], index: 2, kind: output, shape index: {}]
  %s3 = sld [smem:[#allocation0]]
  $region49: #{tpu_custom_call.1} parent=0
    _
  %s5 = ssub.s32 1, %s3
  %s6 = scalar_select 0, %s5, %s3
  $region1: #{tpu_custom_call.1} parent=0
    #allocation2 [shape = 'u8[65536]{0}', space=vmem, size = 0x10000, scoped, tag = 'input window, operand 0']
    #allocation3 [shape = 's32[2]{0}', space=sflag, size = 0x8, scoped, tag = 'scoped memory for tpu_custom_call.1']
    #allocation4 [shape = 's32[2]{0}', space=sflag, size = 0x8, scoped, tag = 'scoped memory for tpu_custom_call.1']
    #allocation5 [shape = 'u8[65536]{0}', space=vmem, size = 0x10000, scoped, tag = 'input window, operand 1']
    #allocation6 [shape = 's32[2]{0}', space=sflag, size = 0x8, scoped, tag = 'scoped memory for tpu_custom_call.1']
    #allocation7 [shape = 'u8[65536]{0}', space=vmem, size = 0x10000, scoped, tag = 'output window, operand 0']
    %7 = vsyncpa [#allocation3], 0
    %s8 = scalar_lea.sflag [#allocation3], 1
    %9 = vsyncpa %s8, 0
    %10 = vsyncpa [#allocation6], 0
    %s11 = scalar_lea.sflag [#allocation6], 1
    %12 = vsyncpa %s11, 0
    %13 = vsyncpa [#allocation4], 0
    %s14 = scalar_lea.sflag [#allocation4], 1
    %15 = vsyncpa %s14, 0
    loop: start=0, step=1, limit=14
    $region2: #{tpu_custom_call.1} parent=1 // loop_pre_header
      _
    $region3: #{tpu_custom_call.1} parent=1 // loop_header
      %s17 = sphi 0, %s21
      %p18 = scmp.ge.s32.totalorder %s17, 14
      %s24 = sphi 0, %s36
      %s25 = sphi 0, %s32
      %s26 = sphi 0, %s24
      %s27 = sphi 0, %s25
      %s28 = sphi 0, %s26
      %s29 = sphi 0, %s27
      %s39 = sphi 0, %s41
      %s42 = sphi 0, %s39
      %s43 = sphi 0, %s42
      %s59 = sphi 0, %s43
      %s65 = sphi 0, %s67
      %s68 = sphi 0, %s65
      %s69 = sphi 0, %s68
      %s85 = sphi 0, %s69
      %s93 = sphi 0, %s95
      %s96 = sphi 0, %s93
      %s97 = sphi 0, %s96
      %s113 = sphi 0, %s97
    $region4: #{tpu_custom_call.1} parent=1 // loop_header_branch
      %20 = sbr.rel (%p18) target = $region8
    $region5: #{tpu_custom_call.1} parent=1 // loop_body
      %s22 = ssub.s32 %s17, 1
      %s23 = ssub.s32 %s17, 2
      %s30 = sadd.s32 1, %s25
      %p31 = scmp.ge.s32.totalorder %s30, 6
      %s32 = scalar_select %p31, 0, %s30
      %s33 = sadd.s32 1, %s24
      %s34 = scalar_select %p31, %s33, %s24
      %p35 = scmp.ge.s32.totalorder %s34, 2
      %s36 = scalar_select %p35, 0, %s34
      %s37 = ssub.s32 %s24, %s36
      %p38 = scmp.eq.s32.totalorder %s37, 0
      %s40 = sadd.s32 %s39, 1
      %s41 = scalar_select %p38, %s39, %s40
      %p44 = pneg %p38
      %p45 = scmp.eq.s32.totalorder %s17, 11
      %p46 = por %p44, %p45
      %p47 = scmp.ne.s32.totalorder %s39, %s42
      %p48 = scmp.eq.s32.totalorder %s17, 0
      %p49 = por %p47, %p48
      %p50 = scmp.ne.s32.totalorder %s39, %s42
      %p51 = scmp.eq.s32.totalorder %s22, 11
      %p52 = por %p50, %p51
      %p53 = scmp.ne.s32.totalorder %s42, %s43
      %p54 = scmp.eq.s32.totalorder %s22, 0
      %p55 = por %p53, %p54
      %p56 = scmp.ne.s32.totalorder %s42, %s43
      %p57 = scmp.eq.s32.totalorder %s23, 11
      %p58 = por %p56, %p57
      %p60 = scmp.ne.s32.totalorder %s43, %s59
      %p61 = scmp.eq.s32.totalorder %s23, 0
      %p62 = por %p60, %p61
      %s63 = ssub.s32 %s25, %s32
      %p64 = scmp.eq.s32.totalorder %s63, 0
      %s66 = sadd.s32 %s65, 1
      %s67 = scalar_select %p64, %s65, %s66
      %p70 = pneg %p64
      %p71 = scmp.eq.s32.totalorder %s17, 11
      %p72 = por %p70, %p71
      %p73 = scmp.ne.s32.totalorder %s65, %s68
      %p74 = scmp.eq.s32.totalorder %s17, 0
      %p75 = por %p73, %p74
      %p76 = scmp.ne.s32.totalorder %s65, %s68
      %p77 = scmp.eq.s32.totalorder %s22, 11
      %p78 = por %p76, %p77
      %p79 = scmp.ne.s32.totalorder %s68, %s69
      %p80 = scmp.eq.s32.totalorder %s22, 0
      %p81 = por %p79, %p80
      %p82 = scmp.ne.s32.totalorder %s68, %s69
      %p83 = scmp.eq.s32.totalorder %s23, 11
      %p84 = por %p82, %p83
      %p86 = scmp.ne.s32.totalorder %s69, %s85
      %p87 = scmp.eq.s32.totalorder %s23, 0
      %p88 = por %p86, %p87
      %s89 = ssub.s32 %s25, %s32
      %s90 = ssub.s32 %s24, %s36
      %s91 = sor.u32 %s89, %s90
      %p92 = scmp.eq.s32.totalorder %s91, 0
      %s94 = sadd.s32 %s93, 1
      %s95 = scalar_select %p92, %s93, %s94
      %p98 = pneg %p92
      %p99 = scmp.eq.s32.totalorder %s17, 11
      %p100 = por %p98, %p99
      %p101 = scmp.ne.s32.totalorder %s93, %s96
      %p102 = scmp.eq.s32.totalorder %s17, 0
      %p103 = por %p101, %p102
      %p104 = scmp.ne.s32.totalorder %s93, %s96
      %p105 = scmp.eq.s32.totalorder %s22, 11
      %p106 = por %p104, %p105
      %p107 = scmp.ne.s32.totalorder %s96, %s97
      %p108 = scmp.eq.s32.totalorder %s22, 0
      %p109 = por %p107, %p108
      %p110 = scmp.ne.s32.totalorder %s96, %s97
      %p111 = scmp.eq.s32.totalorder %s23, 11
      %p112 = por %p110, %p111
      %p114 = scmp.ne.s32.totalorder %s97, %s113
      %p115 = scmp.eq.s32.totalorder %s23, 0
      %p116 = por %p114, %p115
      %p117 = scmp.le.s32.totalorder 1, %s17
      %p118 = scmp.lt.s32.totalorder %s17, 13
      %p119 = pnand %p117, %p118
      %p120 = pneg %p119
      // Predicated region
      $region9: #{tpu_custom_call.1} parent=5 // pred_check
        _
      $region10: #{tpu_custom_call.1} parent=5 // pred_check_branch
        %122 = sbr.rel (%p119) target = $region12
      $region11: #{tpu_custom_call.1} parent=5 // pred_region
        %s123 = ssub.s32 %s17, 1
      $region12: #{tpu_custom_call.1} parent=5 // pred_fallthru
        _
      %p124 = scmp.lt.s32.totalorder %s17, 12
      // Predicated region
      $region13: #{tpu_custom_call.1} parent=5 // pred_check
        %p125 = pneg %p124
      $region14: #{tpu_custom_call.1} parent=5 // pred_check_branch
        %127 = sbr.rel (%p125) target = $region16
      $region15: #{tpu_custom_call.1} parent=5 // pred_region
        // Predicated region
        $region17: #{tpu_custom_call.1} parent=15 // pred_check
          %p128 = pneg %p49
        $region18: #{tpu_custom_call.1} parent=15 // pred_check_branch
          %130 = sbr.rel (%p128) target = $region20
        $region19: #{tpu_custom_call.1} parent=15 // pred_region
          %s131 = sand.u32 %s39, 1
          %s132 = scalar_lea.sflag [#allocation3], %s131
          %s133 = sand.u32 %s39, 1
          %s134 = smul.addr %s133, 64
          %s135 = scalar_lea.vmem [#allocation2], %s134
          %s136 = smul.u32 16, %s24
          %s138 = ssub.s32 1024, 1024
          %139 = vsyncadd %s132, %s138
          %s140 = smul.addr %s136, 64
          %s141 = scalar_lea.hbm %s0, %s140
          %s142 = sshll.u32 %s135, 4
          %s143 = int_to_ptr.vmem [resolvable:$true] %s142
          %148 = dma.hbm_to_vmem [thread:$0]  %s141, 1024, %s143, %s132, 64, 64, 4
        $region20: #{tpu_custom_call.1} parent=15 // pred_fallthru
          _
        // Predicated region
        $region21: #{tpu_custom_call.1} parent=15 // pred_check
          %p149 = pneg %p75
        $region22: #{tpu_custom_call.1} parent=15 // pred_check_branch
          %151 = sbr.rel (%p149) target = $region24
        $region23: #{tpu_custom_call.1} parent=15 // pred_region
          %s152 = sand.u32 %s65, 1
          %s153 = scalar_lea.sflag [#allocation6], %s152
          %s154 = sand.u32 %s65, 1
          %s155 = smul.addr %s154, 64
          %s156 = scalar_lea.vmem [#allocation5], %s155
          %s157 = smul.u32 16, %s25
          %s159 = ssub.s32 1024, 1024
          %160 = vsyncadd %s153, %s159
          %s161 = smul.addr %s157, 64
          %s162 = scalar_lea.hbm %s1, %s161
          %s163 = sshll.u32 %s156, 4
          %s164 = int_to_ptr.vmem [resolvable:$true] %s163
          %169 = dma.hbm_to_vmem [thread:$0]  %s162, 1024, %s164, %s153, 64, 64, 4
        $region24: #{tpu_custom_call.1} parent=15 // pred_fallthru
          _
      $region16: #{tpu_custom_call.1} parent=5 // pred_fallthru
        _
      %p170 = scmp.le.s32.totalorder 1, %s17
      %p171 = scmp.lt.s32.totalorder %s17, 13
      %p172 = pnand %p170, %p171
      %p173 = pneg %p172
      // Predicated region
      $region25: #{tpu_custom_call.1} parent=5 // pred_check
        _
      $region26: #{tpu_custom_call.1} parent=5 // pred_check_branch
        %175 = sbr.rel (%p172) target = $region28
      $region27: #{tpu_custom_call.1} parent=5 // pred_region
        %s176 = ssub.s32 %s17, 1
        %s177 = sand.u32 %s42, 1
        %s178 = scalar_lea.sflag [#allocation3], %s177
        %s179 = sand.u32 %s42, 1
        %s180 = smul.addr %s179, 64
        %s181 = scalar_lea.vmem [#allocation2], %s180
        // Predicated region
        $region29: #{tpu_custom_call.1} parent=27 // pred_check
          %p182 = pneg %p55
        $region30: #{tpu_custom_call.1} parent=27 // pred_check_branch
          %184 = sbr.rel (%p182) target = $region32
        $region31: #{tpu_custom_call.1} parent=27 // pred_region
          %185 = dma.done %s178, 1024
        $region32: #{tpu_custom_call.1} parent=27 // pred_fallthru
          _
        %s186 = sand.u32 %s68, 1
        %s187 = scalar_lea.sflag [#allocation6], %s186
        %s188 = sand.u32 %s68, 1
        %s189 = smul.addr %s188, 64
        %s190 = scalar_lea.vmem [#allocation5], %s189
        // Predicated region
        $region33: #{tpu_custom_call.1} parent=27 // pred_check
          %p191 = pneg %p81
        $region34: #{tpu_custom_call.1} parent=27 // pred_check_branch
          %193 = sbr.rel (%p191) target = $region36
        $region35: #{tpu_custom_call.1} parent=27 // pred_region
          %194 = dma.done %s187, 1024
        $region36: #{tpu_custom_call.1} parent=27 // pred_fallthru
          _
        %s195 = sand.u32 %s42, 1
        %s196 = scalar_lea.sflag [#allocation3], %s195
        %s197 = sand.u32 %s42, 1
        %s198 = smul.addr %s197, 64
        %s199 = scalar_lea.vmem [#allocation2], %s198
        %p200 = pneg %p55
        %p201 = pneg %p52
        %s202 = sand.u32 %s68, 1
        %s203 = scalar_lea.sflag [#allocation6], %s202
        %s204 = sand.u32 %s68, 1
        %s205 = smul.addr %s204, 64
        %s206 = scalar_lea.vmem [#allocation5], %s205
        %p207 = pneg %p81
        %p208 = pneg %p78
        %p209 = pneg %p109
        %p210 = pneg %p106
        %s211 = sand.u32 %s96, 1
        %s212 = scalar_lea.sflag [#allocation4], %s211
        %s213 = sand.u32 %s96, 1
        %s214 = smul.addr %s213, 64
        %s215 = scalar_lea.vmem [#allocation7], %s214
        %s216 = smul.u32 16, %s26
        %s217 = smul.u32 16, %s27
        %s218 = smul.u32 16, %s26
        %v220 = vld [vmem:[%s181] sm:$0xf]
        %v221 = vld [vmem:[%s181 + $0x4] sm:$0xf]
        %v222 = vld [vmem:[%s181 + $0x8] sm:$0xf]
        %v223 = vld [vmem:[%s181 + $0xc] sm:$0xf]
        %v224 = vld [vmem:[%s181 + $0x10] sm:$0xf]
        %v225 = vld [vmem:[%s181 + $0x14] sm:$0xf]
        %v226 = vld [vmem:[%s181 + $0x18] sm:$0xf]
        %v227 = vld [vmem:[%s181 + $0x1c] sm:$0xf]
        %v228 = vld [vmem:[%s181 + $0x20] sm:$0xf]
        %v229 = vld [vmem:[%s181 + $0x24] sm:$0xf]
        %v230 = vld [vmem:[%s181 + $0x28] sm:$0xf]
        %v231 = vld [vmem:[%s181 + $0x2c] sm:$0xf]
        %v232 = vld [vmem:[%s181 + $0x30] sm:$0xf]
        %v233 = vld [vmem:[%s181 + $0x34] sm:$0xf]
        %v234 = vld [vmem:[%s181 + $0x38] sm:$0xf]
        %v235 = vld [vmem:[%s181 + $0x3c] sm:$0xf]
        %v236 = vld [vmem:[%s190] sm:$0xf]
        %v237 = vld [vmem:[%s190 + $0x4] sm:$0xf]
        %v238 = vld [vmem:[%s190 + $0x8] sm:$0xf]
        %v239 = vld [vmem:[%s190 + $0xc] sm:$0xf]
        %v240 = vld [vmem:[%s190 + $0x10] sm:$0xf]
        %v241 = vld [vmem:[%s190 + $0x14] sm:$0xf]
        %v242 = vld [vmem:[%s190 + $0x18] sm:$0xf]
        %v243 = vld [vmem:[%s190 + $0x1c] sm:$0xf]
        %v244 = vld [vmem:[%s190 + $0x20] sm:$0xf]
        %v245 = vld [vmem:[%s190 + $0x24] sm:$0xf]
        %v246 = vld [vmem:[%s190 + $0x28] sm:$0xf]
        %v247 = vld [vmem:[%s190 + $0x2c] sm:$0xf]
        %v248 = vld [vmem:[%s190 + $0x30] sm:$0xf]
        %v249 = vld [vmem:[%s190 + $0x34] sm:$0xf]
        %v250 = vld [vmem:[%s190 + $0x38] sm:$0xf]
        %v251 = vld [vmem:[%s190 + $0x3c] sm:$0xf]
        %v268 = vunpack.c.l.b16 %v220
        %v269 = vunpack.c.l.b16 %v221
        %v270 = vunpack.c.l.b16 %v222
        %v271 = vunpack.c.l.b16 %v223
        %v272 = vunpack.c.l.b16 %v224
        %v273 = vunpack.c.l.b16 %v225
        %v274 = vunpack.c.l.b16 %v226
        %v275 = vunpack.c.l.b16 %v227
        %v276 = vunpack.c.l.b16 %v228
        %v277 = vunpack.c.l.b16 %v229
        %v278 = vunpack.c.l.b16 %v230
        %v279 = vunpack.c.l.b16 %v231
        %v280 = vunpack.c.l.b16 %v232
        %v281 = vunpack.c.l.b16 %v233
        %v282 = vunpack.c.l.b16 %v234
        %v283 = vunpack.c.l.b16 %v235
        %v284 = vpack.c.b16 %v269, %v268
        %v285 = vpack.c.b16 %v271, %v270
        %v286 = vpack.c.b16 %v273, %v272
        %v287 = vpack.c.b16 %v275, %v274
        %v288 = vpack.c.b16 %v277, %v276
        %v289 = vpack.c.b16 %v279, %v278
        %v290 = vpack.c.b16 %v281, %v280
        %v291 = vpack.c.b16 %v283, %v282
        %v316 = vunpack.c.l.b16 %v236
        %v317 = vunpack.c.l.b16 %v237
        %v318 = vunpack.c.l.b16 %v238
        %v319 = vunpack.c.l.b16 %v239
        %v320 = vunpack.c.l.b16 %v240
        %v321 = vunpack.c.l.b16 %v241
        %v322 = vunpack.c.l.b16 %v242
        %v323 = vunpack.c.l.b16 %v243
        %v324 = vunpack.c.l.b16 %v244
        %v325 = vunpack.c.l.b16 %v245
        %v326 = vunpack.c.l.b16 %v246
        %v327 = vunpack.c.l.b16 %v247
        %v328 = vunpack.c.l.b16 %v248
        %v329 = vunpack.c.l.b16 %v249
        %v330 = vunpack.c.l.b16 %v250
        %v331 = vunpack.c.l.b16 %v251
        %v332 = vpack.c.b16 %v317, %v316
        %v333 = vpack.c.b16 %v319, %v318
        %v334 = vpack.c.b16 %v321, %v320
        %v335 = vpack.c.b16 %v323, %v322
        %v336 = vpack.c.b16 %v325, %v324
        %v337 = vpack.c.b16 %v327, %v326
        %v338 = vpack.c.b16 %v329, %v328
        %v339 = vpack.c.b16 %v331, %v330
        %348 = vmatprep.subr.bf16.mxu0 0
        %349 = vmatpush1.bf16.xpose.msra.mxu0 %v339
        %350 = vmatprep.subr.bf16.mxu0 0
        %351 = vmatpush1.bf16.xpose.msra.mxu0 %v338
        %352 = vmatprep.subr.bf16.mxu0 0
        %353 = vmatpush1.bf16.xpose.msra.mxu0 %v337
        %354 = vmatprep.subr.bf16.mxu0 0
        %355 = vmatpush1.bf16.xpose.msra.mxu0 %v336
        %356 = vmatprep.subr.bf16.mxu0 0
        %357 = vmatpush1.bf16.xpose.msra.mxu0 %v335
        %358 = vmatprep.subr.bf16.mxu0 0
        %359 = vmatpush1.bf16.xpose.msra.mxu0 %v334
        %360 = vmatprep.subr.bf16.mxu0 0
        %361 = vmatpush1.bf16.xpose.msra.mxu0 %v333
        %362 = vmatprep.subr.bf16.mxu0 0
        %363 = vmatpush1.bf16.xpose.msra.mxu0 %v332
        %364 = vmatprep.subr.bf16.mxu0 0
        %365 = vmatpush2.bf16.xpose.msra.mxu0 0
        %366 = vmatprep.subr.bf16.mxu0 0
        %367 = vmatpush2.bf16.xpose.msra.mxu0 0
        %368 = vmatprep.subr.bf16.mxu0 0
        %369 = vmatpush2.bf16.xpose.msra.mxu0 0
        %370 = vmatprep.subr.bf16.mxu0 0
        %371 = vmatpush2.bf16.xpose.msra.mxu0 0
        %372 = vmatprep.subr.bf16.mxu0 0
        %373 = vmatpush2.bf16.xpose.msra.mxu0 0
        %374 = vmatprep.subr.bf16.mxu0 0
        %375 = vmatpush2.bf16.xpose.msra.mxu0 0
        %376 = vmatprep.subr.bf16.mxu0 0
        %377 = vmatpush2.bf16.xpose.msra.mxu0 0
        %378 = vmatprep.subr.bf16.mxu0 0
        %379 = vmatpush2.bf16.xpose.msra.mxu0 0
        %380 = vmatprep.mubr.bf16.mxu0 0
        %381 = vmatmul.mubr.bf16.gmra.mxu0 %v284
        %v382 = vpop.f32.mrf.mxu0
        %v383 = vadd.f32 0.0, %v382
        %v384 = vpop.f32.mrf.mxu0
        %v385 = vpop.f32.mrf.mxu0
        %v386 = vadd.f32 0.0, %v385
        %v387 = vpop.f32.mrf.mxu0
        %388 = vmatprep.mubr.bf16.mxu0 0
        %389 = vmatmul.mubr.bf16.gmra.mxu0 %v285
        %v390 = vpop.f32.mrf.mxu0
        %v391 = vadd.f32 0.0, %v390
        %v392 = vpop.f32.mrf.mxu0
        %v393 = vpop.f32.mrf.mxu0
        %v394 = vadd.f32 0.0, %v393
        %v395 = vpop.f32.mrf.mxu0
        %396 = vmatprep.mubr.bf16.mxu0 0
        %397 = vmatmul.mubr.bf16.gmra.mxu0 %v286
        %v398 = vpop.f32.mrf.mxu0
        %v399 = vadd.f32 0.0, %v398
        %v400 = vpop.f32.mrf.mxu0
        %v401 = vpop.f32.mrf.mxu0
        %v402 = vadd.f32 0.0, %v401
        %v403 = vpop.f32.mrf.mxu0
        %404 = vmatprep.mubr.bf16.mxu0 0
        %405 = vmatmul.mubr.bf16.gmra.mxu0 %v287
        %v406 = vpop.f32.mrf.mxu0
        %v407 = vadd.f32 0.0, %v406
        %v408 = vpop.f32.mrf.mxu0
        %v409 = vpop.f32.mrf.mxu0
        %v410 = vadd.f32 0.0, %v409
        %v411 = vpop.f32.mrf.mxu0
        %412 = vmatprep.mubr.bf16.mxu0 0
        %413 = vmatmul.mubr.bf16.gmra.mxu0 %v288
        %v414 = vpop.f32.mrf.mxu0
        %v415 = vadd.f32 0.0, %v414
        %v416 = vpop.f32.mrf.mxu0
        %v417 = vpop.f32.mrf.mxu0
        %v418 = vadd.f32 0.0, %v417
        %v419 = vpop.f32.mrf.mxu0
        %420 = vmatprep.mubr.bf16.mxu0 0
        %421 = vmatmul.mubr.bf16.gmra.mxu0 %v289
        %v422 = vpop.f32.mrf.mxu0
        %v423 = vadd.f32 0.0, %v422
        %v424 = vpop.f32.mrf.mxu0
        %v425 = vpop.f32.mrf.mxu0
        %v426 = vadd.f32 0.0, %v425
        %v427 = vpop.f32.mrf.mxu0
        %428 = vmatprep.mubr.bf16.mxu0 0
        %429 = vmatmul.mubr.bf16.gmra.mxu0 %v290
        %v430 = vpop.f32.mrf.mxu0
        %v431 = vadd.f32 0.0, %v430
        %v432 = vpop.f32.mrf.mxu0
        %v433 = vpop.f32.mrf.mxu0
        %v434 = vadd.f32 0.0, %v433
        %v435 = vpop.f32.mrf.mxu0
        %436 = vmatprep.mubr.bf16.mxu0 0
        %437 = vmatmul.mubr.bf16.gmra.mxu0 %v291
        %v438 = vpop.f32.mrf.mxu0
        %v439 = vadd.f32 0.0, %v438
        %v440 = vpop.f32.mrf.mxu0
        %v441 = vpop.f32.mrf.mxu0
        %v442 = vadd.f32 0.0, %v441
        %v443 = vpop.f32.mrf.mxu0
        %444 = vdwg.mxu0
        %v445 = vpack.c.bf16 %v386, %v383
        %v446 = vpack.c.bf16 %v394, %v391
        %v447 = vpack.c.bf16 %v402, %v399
        %v448 = vpack.c.bf16 %v410, %v407
        %v449 = vpack.c.bf16 %v418, %v415
        %v450 = vpack.c.bf16 %v426, %v423
        %v451 = vpack.c.bf16 %v434, %v431
        %v452 = vpack.c.bf16 %v442, %v439
        %v461 = vunpack.c.l.b16 %v445
        %v462 = vunpack.c.h.b16 %v445
        %v463 = vunpack.c.l.b16 %v446
        %v464 = vunpack.c.h.b16 %v446
        %v465 = vunpack.c.l.b16 %v447
        %v466 = vunpack.c.h.b16 %v447
        %v467 = vunpack.c.l.b16 %v448
        %v468 = vunpack.c.h.b16 %v448
        %v469 = vunpack.c.l.b16 %v449
        %v470 = vunpack.c.h.b16 %v449
        %v471 = vunpack.c.l.b16 %v450
        %v472 = vunpack.c.h.b16 %v450
        %v473 = vunpack.c.l.b16 %v451
        %v474 = vunpack.c.h.b16 %v451
        %v475 = vunpack.c.l.b16 %v452
        %v476 = vunpack.c.h.b16 %v452
        %v477 = vpack.c.b16 %v461, %v461
        %v478 = vpack.c.b16 %v462, %v462
        %v479 = vpack.c.b16 %v463, %v463
        %v480 = vpack.c.b16 %v464, %v464
        %v481 = vpack.c.b16 %v465, %v465
        %v482 = vpack.c.b16 %v466, %v466
        %v483 = vpack.c.b16 %v467, %v467
        %v484 = vpack.c.b16 %v468, %v468
        %v485 = vpack.c.b16 %v469, %v469
        %v486 = vpack.c.b16 %v470, %v470
        %v487 = vpack.c.b16 %v471, %v471
        %v488 = vpack.c.b16 %v472, %v472
        %v489 = vpack.c.b16 %v473, %v473
        %v490 = vpack.c.b16 %v474, %v474
        %v491 = vpack.c.b16 %v475, %v475
        %v492 = vpack.c.b16 %v476, %v476
        %509 = vst [vmem:[%s215] sm:$0xf] %v477
        %510 = vst [vmem:[%s215 + $0x4] sm:$0xf] %v478
        %511 = vst [vmem:[%s215 + $0x8] sm:$0xf] %v479
        %512 = vst [vmem:[%s215 + $0xc] sm:$0xf] %v480
        %513 = vst [vmem:[%s215 + $0x10] sm:$0xf] %v481
        %514 = vst [vmem:[%s215 + $0x14] sm:$0xf] %v482
        %515 = vst [vmem:[%s215 + $0x18] sm:$0xf] %v483
        %516 = vst [vmem:[%s215 + $0x1c] sm:$0xf] %v484
        %517 = vst [vmem:[%s215 + $0x20] sm:$0xf] %v485
        %518 = vst [vmem:[%s215 + $0x24] sm:$0xf] %v486
        %519 = vst [vmem:[%s215 + $0x28] sm:$0xf] %v487
        %520 = vst [vmem:[%s215 + $0x2c] sm:$0xf] %v488
        %521 = vst [vmem:[%s215 + $0x30] sm:$0xf] %v489
        %522 = vst [vmem:[%s215 + $0x34] sm:$0xf] %v490
        %523 = vst [vmem:[%s215 + $0x38] sm:$0xf] %v491
        %524 = vst [vmem:[%s215 + $0x3c] sm:$0xf] %v492
        %s525 = sand.u32 %s96, 1
        %s526 = scalar_lea.sflag [#allocation4], %s525
        %s527 = sand.u32 %s96, 1
        %s528 = smul.addr %s527, 64
        %s529 = scalar_lea.vmem [#allocation7], %s528
        // Predicated region
        $region37: #{tpu_custom_call.1} parent=27 // pred_check
          %p530 = pneg %p106
        $region38: #{tpu_custom_call.1} parent=27 // pred_check_branch
          %532 = sbr.rel (%p530) target = $region40
        $region39: #{tpu_custom_call.1} parent=27 // pred_region
          %s533 = smul.u32 16, %s26
          %s535 = ssub.s32 1024, 1024
          %536 = vsyncadd %s526, %s535
          %s537 = smul.addr %s27, 32
          %s538 = sadd.s32 %s533, %s537
          %s539 = smul.addr %s538, 64
          %s540 = scalar_lea.hbm %s2, %s539
          %s541 = sshll.u32 %s529, 4
          %s542 = int_to_ptr.vmem [resolvable:$true] %s541
          %547 = dma.vmem_to_hbm [thread:$0]  %s542, 1024, %s540, %s526, 64, 64, 4
        $region40: #{tpu_custom_call.1} parent=27 // pred_fallthru
          _
      $region28: #{tpu_custom_call.1} parent=5 // pred_fallthru
        _
      %p548 = scmp.le.s32.totalorder 2, %s17
      // Predicated region
      $region41: #{tpu_custom_call.1} parent=5 // pred_check
        %p549 = pneg %p548
      $region42: #{tpu_custom_call.1} parent=5 // pred_check_branch
        %551 = sbr.rel (%p549) target = $region44
      $region43: #{tpu_custom_call.1} parent=5 // pred_region
        %s552 = ssub.s32 %s17, 2
        // Predicated region
        $region45: #{tpu_custom_call.1} parent=43 // pred_check
          %p553 = pneg %p112
        $region46: #{tpu_custom_call.1} parent=43 // pred_check_branch
          %555 = sbr.rel (%p553) target = $region48
        $region47: #{tpu_custom_call.1} parent=43 // pred_region
          %s556 = sand.u32 %s97, 1
          %s557 = scalar_lea.sflag [#allocation4], %s556
          %s558 = sand.u32 %s97, 1
          %s559 = smul.addr %s558, 64
          %s560 = scalar_lea.vmem [#allocation7], %s559
          %561 = dma.done %s557, 1024
        $region48: #{tpu_custom_call.1} parent=43 // pred_fallthru
          _
      $region44: #{tpu_custom_call.1} parent=5 // pred_fallthru
        _
    $region6: #{tpu_custom_call.1} parent=1 // loop_footer
      %s21 = sadd.s32 1, %s17
    $region7: #{tpu_custom_call.1} parent=1 // loop_footer_branch
      %16 = sbr.rel target = $region3
    $region8: #{tpu_custom_call.1} parent=1 // loop_exit
      _
    %562 = vsyncpa [#allocation3], 1
    %s563 = scalar_lea.sflag [#allocation3], 1
    %564 = vsyncpa %s563, 1
    %565 = vsyncpa [#allocation6], 1
    %s566 = scalar_lea.sflag [#allocation6], 1
    %567 = vsyncpa %s566, 1
    %568 = vsyncpa [#allocation4], 1
    %s569 = scalar_lea.sflag [#allocation4], 1
    %570 = vsyncpa %s569, 1

</llo_original>
